<compile_context>
chip_gen: v7x
topology: tpu7x:2x2x1
jax: 0.10.0
libtpu: 0.0.40
codegen_flags: <defaults>
</compile_context>

<pallas_src>
import functools

import jax
import jax.numpy as jnp
from jax.experimental import pallas as pl
from jax.experimental.pallas import tpu as pltpu

EPS = 1e-5
LANE = 128
HIDDEN = 512


def _bn_relu(h, gamma, beta):
    """Training-mode BatchNorm1d (biased var) folded to one scale/shift, + ReLU."""
    mean = jnp.mean(h, axis=0, keepdims=True)
    centered = h - mean
    var = jnp.mean(centered * centered, axis=0, keepdims=True)
    scale = gamma * jax.lax.rsqrt(var + EPS)          # (1, H) — tiny
    return jnp.maximum(centered * scale + beta, 0.0)  # 2 VPU ops on the big tile


def generator_kernel(x_ref, w1_ref, w2_ref, w3_ref, bn_ref, b3_ref, out_ref):
    bn = bn_ref[...]  # (4, 512): rows = [gamma1, beta1, gamma2, beta2]

    # Layer 1: Linear (bias dropped: dead under training-mode BN) -> BN -> ReLU.
    h = jnp.dot(x_ref[...], w1_ref[...], preferred_element_type=jnp.float32)
    h = _bn_relu(h, bn[0:1, :], bn[1:2, :])

    # Layer 2: Linear (bias dropped, same reason) -> BN -> ReLU.
    h = jnp.dot(h, w2_ref[...], preferred_element_type=jnp.float32)
    h = _bn_relu(h, bn[2:3, :], bn[3:4, :])

    # Layer 3: Linear into a lane-dense (column-padded) output block.
    out = jnp.dot(h, w3_ref[...], preferred_element_type=jnp.float32) + b3_ref[...]
    out_ref[...] = out.astype(out_ref.dtype)


@functools.partial(jax.jit, static_argnames=("output_shape",))
def generator_forward(noise, condition, params, output_shape):
    # Pre-concatenate once in the wrapper (tiny; one operand + one matmul for
    # layer 1 beats the two-operand split-K variant on descriptor count).
    x = jnp.concatenate([noise, condition], axis=1).astype(jnp.float32)
    B, in_dim = x.shape
    out_dim = 1
    for d in output_shape:
        out_dim *= d
    out_pad = params["w3p"].shape[1]

    operands = (x, params["w1"], params["w2"], params["w3p"],
                params["bn"], params["b3p"])

    flops = 2 * B * (in_dim * HIDDEN + HIDDEN * HIDDEN + HIDDEN * out_pad)
    bytes_accessed = 4 * (x.size + params["w1"].size + params["w2"].size +
                          params["w3p"].size + params["bn"].size +
                          params["b3p"].size + B * out_pad)
    cost = pl.CostEstimate(flops=flops, transcendentals=2 * HIDDEN,
                           bytes_accessed=bytes_accessed)

    vmem = pl.BlockSpec(memory_space=pltpu.MemorySpace.VMEM)
    out = pl.pallas_call(
        generator_kernel,
        out_shape=jax.ShapeDtypeStruct((B, out_pad), jnp.float32),
        in_specs=[vmem] * len(operands),
        out_specs=vmem,
        cost_estimate=cost,
    )(*operands)

    return out[:, :out_dim].reshape((B,) + tuple(output_shape))


def init_params(key, latent_dim, cond_dim, output_shape, hidden=HIDDEN):
    """Deterministic init matching PyTorch Linear default U(-1/sqrt(fan_in), +),
    plus precomputed kernel-layout views (packed BN params, lane-padded w3/b3)."""
    in_dim = latent_dim + cond_dim
    out_dim = 1
    for d in output_shape:
        out_dim *= d

    keys = jax.random.split(key, 6)

    def linear(kw, kb, fan_in, fan_out):
        bound = 1.0 / float(fan_in) ** 0.5
        w = jax.random.uniform(kw, (fan_in, fan_out), jnp.float32, -bound, bound)
        b = jax.random.uniform(kb, (1, fan_out), jnp.float32, -bound, bound)
        return w, b

    w1, b1 = linear(keys[0], keys[1], in_dim, hidden)
    w2, b2 = linear(keys[2], keys[3], hidden, hidden)
    w3, b3 = linear(keys[4], keys[5], hidden, out_dim)

    out_pad = ((out_dim + LANE - 1) // LANE) * LANE
    pad = out_pad - out_dim

    ones = jnp.ones((1, hidden), jnp.float32)
    zeros = jnp.zeros((1, hidden), jnp.float32)

    return {
        # PyTorch-equivalent parameters (used by the plain-JAX reference).
        "w1": w1, "b1": b1, "g1": ones, "be1": zeros,
        "w2": w2, "b2": b2, "g2": ones, "be2": zeros,
        "w3": w3, "b3": b3,
        # Kernel-layout views (computed once at init, not per call).
        "bn": jnp.concatenate([ones, zeros, ones, zeros], axis=0),  # (4, 512)
        "w3p": jnp.pad(w3, ((0, 0), (0, pad))),
        "b3p": jnp.pad(b3, ((0, 0), (0, pad))),
    }


def reference_forward(noise, condition, params, output_shape):
    """Plain-JAX reference with the exact PyTorch semantics (incl. b1/b2)."""
    x = jnp.concatenate([noise, condition], axis=1).astype(jnp.float32)

    def bn_relu(h, g, b):
        m = jnp.mean(h, axis=0, keepdims=True)
        v = jnp.mean((h - m) ** 2, axis=0, keepdims=True)
        return jnp.maximum((h - m) / jnp.sqrt(v + EPS) * g + b, 0.0)

    h = bn_relu(x @ params["w1"] + params["b1"], params["g1"], params["be1"])
    h = bn_relu(h @ params["w2"] + params["b2"], params["g2"], params["be2"])
    out = h @ params["w3"] + params["b3"]
    return out.reshape((x.shape[0],) + tuple(output_shape))


if __name__ == "__main__":
    latent_dim = 16
    cond_dim = 8
    output_shape = (1, 8, 8)   # prod = 64 (padded to 128 lanes inside the kernel)
    batch = 8                  # >1 required for batch-stat BatchNorm1d

    key = jax.random.PRNGKey(0)
    k_params, k_noise, k_cond = jax.random.split(key, 3)

    params = init_params(k_params, latent_dim, cond_dim, output_shape)
    noise = jax.random.normal(k_noise, (batch, latent_dim), jnp.float32)
    condition = jax.random.normal(k_cond, (batch, cond_dim), jnp.float32)

    out = generator_forward(noise, condition, params, output_shape)
    out = jax.block_until_ready(out)

    ref = reference_forward(noise, condition, params, output_shape)
    assert out.shape == (batch,) + output_shape, out.shape
    assert jnp.allclose(out, ref, rtol=1e-4, atol=1e-4), "mismatch vs reference"

    print("KERNEL_OK")
</pallas_src>

<mosaic_0001>
module attributes {stable_mosaic.version = 11 : i64} {
  func.func @generator_kernel(%arg0: memref<8x24xf32, #tpu.memory_space<vmem>>, %arg1: memref<24x512xf32, #tpu.memory_space<vmem>>, %arg2: memref<512x512xf32, #tpu.memory_space<vmem>>, %arg3: memref<512x128xf32, #tpu.memory_space<vmem>>, %arg4: memref<4x512xf32, #tpu.memory_space<vmem>>, %arg5: memref<1x128xf32, #tpu.memory_space<vmem>>, %arg6: memref<8x128xf32, #tpu.memory_space<vmem>>) attributes {dimension_semantics = [], scalar_prefetch = 0 : i64, scratch_operands = 0 : i64, tpu.core_type = #tpu.core_type<tc>} {
    %c0 = arith.constant 0 : index
    %c0_0 = arith.constant 0 : index
    %0 = vector.load %arg4[%c0, %c0_0] : memref<4x512xf32, #tpu.memory_space<vmem>>, vector<4x512xf32>
    %c0_1 = arith.constant 0 : index
    %c0_2 = arith.constant 0 : index
    %1 = vector.load %arg0[%c0_1, %c0_2] : memref<8x24xf32, #tpu.memory_space<vmem>>, vector<8x24xf32>
    %c0_3 = arith.constant 0 : index
    %c0_4 = arith.constant 0 : index
    %2 = vector.load %arg1[%c0_3, %c0_4] : memref<24x512xf32, #tpu.memory_space<vmem>>, vector<24x512xf32>
    %cst = arith.constant dense<0.000000e+00> : vector<8x512xf32>
    %3 = tpu.matmul %1, %2, %cst {dimension_numbers = #tpu.dot_dimension_numbers<[1], [0], [0], [1], [0, 0, 1, 1], [], []>} : vector<8x24xf32>, vector<24x512xf32>, vector<8x512xf32> -> vector<8x512xf32>
    %4 = vector.extract_strided_slice %0 {offsets = [0, 0], sizes = [1, 512], strides = [1, 1]} : vector<4x512xf32> to vector<1x512xf32>
    %5 = vector.extract_strided_slice %0 {offsets = [1, 0], sizes = [1, 512], strides = [1, 1]} : vector<4x512xf32> to vector<1x512xf32>
    %cst_5 = arith.constant dense<0.000000e+00> : vector<512xf32>
    %6 = vector.multi_reduction <add>, %3, %cst_5 [0] : vector<8x512xf32> to vector<512xf32>
    %7 = vector.shape_cast %6 : vector<512xf32> to vector<1x512xf32>
    %cst_6 = arith.constant 8.000000e+00 : f32
    %8 = vector.broadcast %cst_6 : f32 to vector<1x512xf32>
    %9 = arith.divf %7, %8 : vector<1x512xf32>
    %10 = vector.broadcast %9 : vector<1x512xf32> to vector<8x512xf32>
    %11 = arith.subf %3, %10 : vector<8x512xf32>
    %12 = arith.mulf %11, %11 : vector<8x512xf32>
    %cst_7 = arith.constant dense<0.000000e+00> : vector<512xf32>
    %13 = vector.multi_reduction <add>, %12, %cst_7 [0] : vector<8x512xf32> to vector<512xf32>
    %14 = vector.shape_cast %13 : vector<512xf32> to vector<1x512xf32>
    %cst_8 = arith.constant 8.000000e+00 : f32
    %15 = vector.broadcast %cst_8 : f32 to vector<1x512xf32>
    %16 = arith.divf %14, %15 : vector<1x512xf32>
    %cst_9 = arith.constant 9.99999974E-6 : f32
    %17 = vector.broadcast %cst_9 : f32 to vector<1x512xf32>
    %18 = arith.addf %16, %17 : vector<1x512xf32>
    %19 = math.rsqrt %18 : vector<1x512xf32>
    %20 = arith.mulf %4, %19 : vector<1x512xf32>
    %21 = vector.broadcast %20 : vector<1x512xf32> to vector<8x512xf32>
    %22 = arith.mulf %11, %21 : vector<8x512xf32>
    %23 = vector.broadcast %5 : vector<1x512xf32> to vector<8x512xf32>
    %24 = arith.addf %22, %23 : vector<8x512xf32>
    %cst_10 = arith.constant 0.000000e+00 : f32
    %25 = vector.broadcast %cst_10 : f32 to vector<8x512xf32>
    %26 = arith.maximumf %24, %25 : vector<8x512xf32>
    %c0_11 = arith.constant 0 : index
    %c0_12 = arith.constant 0 : index
    %27 = vector.load %arg2[%c0_11, %c0_12] : memref<512x512xf32, #tpu.memory_space<vmem>>, vector<512x512xf32>
    %cst_13 = arith.constant dense<0.000000e+00> : vector<8x512xf32>
    %28 = tpu.matmul %26, %27, %cst_13 {dimension_numbers = #tpu.dot_dimension_numbers<[1], [0], [0], [1], [0, 0, 1, 1], [], []>} : vector<8x512xf32>, vector<512x512xf32>, vector<8x512xf32> -> vector<8x512xf32>
    %29 = vector.extract_strided_slice %0 {offsets = [2, 0], sizes = [1, 512], strides = [1, 1]} : vector<4x512xf32> to vector<1x512xf32>
    %30 = vector.extract_strided_slice %0 {offsets = [3, 0], sizes = [1, 512], strides = [1, 1]} : vector<4x512xf32> to vector<1x512xf32>
    %cst_14 = arith.constant dense<0.000000e+00> : vector<512xf32>
    %31 = vector.multi_reduction <add>, %28, %cst_14 [0] : vector<8x512xf32> to vector<512xf32>
    %32 = vector.shape_cast %31 : vector<512xf32> to vector<1x512xf32>
    %cst_15 = arith.constant 8.000000e+00 : f32
    %33 = vector.broadcast %cst_15 : f32 to vector<1x512xf32>
    %34 = arith.divf %32, %33 : vector<1x512xf32>
    %35 = vector.broadcast %34 : vector<1x512xf32> to vector<8x512xf32>
    %36 = arith.subf %28, %35 : vector<8x512xf32>
    %37 = arith.mulf %36, %36 : vector<8x512xf32>
    %cst_16 = arith.constant dense<0.000000e+00> : vector<512xf32>
    %38 = vector.multi_reduction <add>, %37, %cst_16 [0] : vector<8x512xf32> to vector<512xf32>
    %39 = vector.shape_cast %38 : vector<512xf32> to vector<1x512xf32>
    %cst_17 = arith.constant 8.000000e+00 : f32
    %40 = vector.broadcast %cst_17 : f32 to vector<1x512xf32>
    %41 = arith.divf %39, %40 : vector<1x512xf32>
    %cst_18 = arith.constant 9.99999974E-6 : f32
    %42 = vector.broadcast %cst_18 : f32 to vector<1x512xf32>
    %43 = arith.addf %41, %42 : vector<1x512xf32>
    %44 = math.rsqrt %43 : vector<1x512xf32>
    %45 = arith.mulf %29, %44 : vector<1x512xf32>
    %46 = vector.broadcast %45 : vector<1x512xf32> to vector<8x512xf32>
    %47 = arith.mulf %36, %46 : vector<8x512xf32>
    %48 = vector.broadcast %30 : vector<1x512xf32> to vector<8x512xf32>
    %49 = arith.addf %47, %48 : vector<8x512xf32>
    %cst_19 = arith.constant 0.000000e+00 : f32
    %50 = vector.broadcast %cst_19 : f32 to vector<8x512xf32>
    %51 = arith.maximumf %49, %50 : vector<8x512xf32>
    %c0_20 = arith.constant 0 : index
    %c0_21 = arith.constant 0 : index
    %52 = vector.load %arg3[%c0_20, %c0_21] : memref<512x128xf32, #tpu.memory_space<vmem>>, vector<512x128xf32>
    %cst_22 = arith.constant dense<0.000000e+00> : vector<8x128xf32>
    %53 = tpu.matmul %51, %52, %cst_22 {dimension_numbers = #tpu.dot_dimension_numbers<[1], [0], [0], [1], [0, 0, 1, 1], [], []>} : vector<8x512xf32>, vector<512x128xf32>, vector<8x128xf32> -> vector<8x128xf32>
    %c0_23 = arith.constant 0 : index
    %c0_24 = arith.constant 0 : index
    %54 = vector.load %arg5[%c0_23, %c0_24] : memref<1x128xf32, #tpu.memory_space<vmem>>, vector<1x128xf32>
    %55 = vector.broadcast %54 : vector<1x128xf32> to vector<8x128xf32>
    %56 = arith.addf %53, %55 : vector<8x128xf32>
    %c0_25 = arith.constant 0 : index
    %c0_26 = arith.constant 0 : index
    %57 = vector.load %arg6[%c0_25, %c0_26] : memref<8x128xf32, #tpu.memory_space<vmem>>, vector<8x128xf32>
    tpu.vector_store %arg6[%c0_25, %c0_26], %56 {strides = array<i32>} : memref<8x128xf32, #tpu.memory_space<vmem>>, vector<8x128xf32>,
    return
  }
}

</mosaic_0001>

<llo_original>
// kernel: generator_forward.1
$region0: #{generator_forward.1}
  #allocation0 [shape = 'u32[]', space=smem, size = 0x4, offset = 0x4, fixed_abs, tag = 'smem constant byte address 0x4 - core index']
  #allocation1 [shape = 'u32[144,128]{1,0:T(1,128)}', space=vmem, size = 0x12000, scoped, tag = 'internal scratch']
  %s0 = inlined_call_operand.vmem [shape: f32[8,24], index: 0, kind: input, shape index: {}]
  %s1 = inlined_call_operand.hbm [shape: f32[24,512], index: 1, kind: input, shape index: {}]
  %s2 = inlined_call_operand.hbm [shape: f32[512,512], index: 2, kind: input, shape index: {}]
  %s3 = inlined_call_operand.hbm [shape: f32[512,128], index: 3, kind: input, shape index: {}]
  %s4 = inlined_call_operand.vmem [shape: f32[4,512], index: 4, kind: input, shape index: {}]
  %s5 = inlined_call_operand.vmem [shape: f32[1,128], index: 5, kind: input, shape index: {}]
  %s6 = inlined_call_operand.vmem [shape: f32[8,128], index: 6, kind: output, shape index: {}]
  %s7 = sld [smem:[#allocation0]]
  $region46: #{generator_forward.1} parent=0
    _
  %s9 = ssub.s32 1, %s7
  %s10 = scalar_select 0, %s9, %s7
  $region1: #{generator_forward.1} parent=0
    #allocation2 [shape = 'u8[49152]{0}', space=vmem, size = 0xc000, scoped, tag = 'input window, operand 1, single buffered']
    #allocation3 [shape = 's32[1]{0}', space=sflag, size = 0x4, scoped, tag = 'scoped memory for generator_forward.1']
    #allocation4 [shape = 'u8[1048576]{0}', space=vmem, size = 0x100000, scoped, tag = 'input window, operand 2, single buffered']
    #allocation5 [shape = 's32[1]{0}', space=sflag, size = 0x4, scoped, tag = 'scoped memory for generator_forward.1']
    #allocation6 [shape = 'u8[262144]{0}', space=vmem, size = 0x40000, scoped, tag = 'input window, operand 3, single buffered']
    %11 = vsyncpa [#allocation3], 0
    %12 = vsyncpa [#allocation5], 0
    // Predicated region
    $region2: #{generator_forward.1} parent=1 // pred_check
      _
    $region3: #{generator_forward.1} parent=1 // pred_check_branch
      %14 = sbr.rel (0) target = $region5
    $region4: #{generator_forward.1} parent=1 // pred_region
      _
    $region5: #{generator_forward.1} parent=1 // pred_fallthru
      _
    // Predicated region
    $region6: #{generator_forward.1} parent=1 // pred_check
      _
    $region7: #{generator_forward.1} parent=1 // pred_check_branch
      %16 = sbr.rel (0) target = $region9
    $region8: #{generator_forward.1} parent=1 // pred_region
      %s18 = ssub.s32 1536, 1536
      %19 = vsyncadd [#allocation3], %s18
      %s20 = sshll.u32 [#allocation2], 4
      %s21 = int_to_ptr.vmem [resolvable:$true] %s20
      %26 = dma.hbm_to_vmem [thread:$0]  %s1, 1536, %s21, [#allocation3], 512, 512, 32
    $region9: #{generator_forward.1} parent=1 // pred_fallthru
      _
    // Predicated region
    $region10: #{generator_forward.1} parent=1 // pred_check
      _
    $region11: #{generator_forward.1} parent=1 // pred_check_branch
      %28 = sbr.rel (0) target = $region13
    $region12: #{generator_forward.1} parent=1 // pred_region
      %s30 = ssub.s32 32768, 32768
      %31 = vsyncadd [#allocation5], %s30
      %s32 = sshll.u32 [#allocation4], 4
      %s33 = int_to_ptr.vmem [resolvable:$true] %s32
      %38 = dma.hbm_to_vmem [thread:$0]  %s2, 32768, %s33, [#allocation5], 512, 512, 32
    $region13: #{generator_forward.1} parent=1 // pred_fallthru
      _
    // Predicated region
    $region14: #{generator_forward.1} parent=1 // pred_check
      _
    $region15: #{generator_forward.1} parent=1 // pred_check_branch
      %40 = sbr.rel (0) target = $region17
    $region16: #{generator_forward.1} parent=1 // pred_region
      %s42 = ssub.s32 8192, 8192
      %43 = vsyncadd [#allocation5], %s42
      %s44 = sshll.u32 [#allocation6], 4
      %s45 = int_to_ptr.vmem [resolvable:$true] %s44
      %50 = dma.hbm_to_vmem [thread:$0]  %s3, 8192, %s45, [#allocation5], 128, 128, 8
    $region17: #{generator_forward.1} parent=1 // pred_fallthru
      _
    // Predicated region
    $region18: #{generator_forward.1} parent=1 // pred_check
      _
    $region19: #{generator_forward.1} parent=1 // pred_check_branch
      %52 = sbr.rel (0) target = $region21
    $region20: #{generator_forward.1} parent=1 // pred_region
      _
    $region21: #{generator_forward.1} parent=1 // pred_fallthru
      _
    // Predicated region
    $region22: #{generator_forward.1} parent=1 // pred_check
      _
    $region23: #{generator_forward.1} parent=1 // pred_check_branch
      %54 = sbr.rel (0) target = $region25
    $region24: #{generator_forward.1} parent=1 // pred_region
      _
    $region25: #{generator_forward.1} parent=1 // pred_fallthru
      _
    // Predicated region
    $region26: #{generator_forward.1} parent=1 // pred_check
      _
    $region27: #{generator_forward.1} parent=1 // pred_check_branch
      %56 = sbr.rel (0) target = $region29
    $region28: #{generator_forward.1} parent=1 // pred_region
      %57 = dma.done [#allocation3], 1536
    $region29: #{generator_forward.1} parent=1 // pred_fallthru
      _
    // Predicated region
    $region30: #{generator_forward.1} parent=1 // pred_check
      _
    $region31: #{generator_forward.1} parent=1 // pred_check_branch
      %59 = sbr.rel (0) target = $region33
    $region32: #{generator_forward.1} parent=1 // pred_region
      %60 = dma.done [#allocation5], 32768
    $region33: #{generator_forward.1} parent=1 // pred_fallthru
      _
    // Predicated region
    $region34: #{generator_forward.1} parent=1 // pred_check
      _
    $region35: #{generator_forward.1} parent=1 // pred_check_branch
      %62 = sbr.rel (0) target = $region37
    $region36: #{generator_forward.1} parent=1 // pred_region
      %63 = dma.done [#allocation5], 8192
    $region37: #{generator_forward.1} parent=1 // pred_fallthru
      _
    %v64 = vld [vmem:[%s4] sm:$0xff]
    %v65 = vld [vmem:[%s4 + $0x8] sm:$0xff]
    %v66 = vld [vmem:[%s0] sm:$0xff]
    %v67 = vld [vmem:[#allocation2] sm:$0xff]
    %v68 = vld [vmem:[#allocation2 + $0x8] sm:$0xff]
    %v69 = vld [vmem:[#allocation2 + $0x10] sm:$0xff]
    %v70 = vld [vmem:[#allocation2 + $0x18] sm:$0xff]
    %v71 = vld [vmem:[#allocation2 + $0x20] sm:$0xff]
    %v72 = vld [vmem:[#allocation2 + $0x28] sm:$0xff]
    %v73 = vld [vmem:[#allocation2 + $0x30] sm:$0xff]
    %v74 = vld [vmem:[#allocation2 + $0x38] sm:$0xff]
    %v75 = vld [vmem:[#allocation2 + $0x40] sm:$0xff]
    %v76 = vld [vmem:[#allocation2 + $0x48] sm:$0xff]
    %v77 = vld [vmem:[#allocation2 + $0x50] sm:$0xff]
    %v78 = vld [vmem:[#allocation2 + $0x58] sm:$0xff]
    %vm79 = vcmask 195584
    %v81 = vsel %vm79, %v66, 0
    %83 = vmatprep.subr.mxu0 %v68
    %84 = vmatpush1.msra.mxu0 %v67
    %85 = vmatprep.subr.mxu0 %v72
    %86 = vmatpush1.msra.mxu0 %v71
    %87 = vmatprep.subr.mxu0 %v76
    %88 = vmatpush1.msra.mxu0 %v75
    %89 = vmatprep.subr.mxu0 0.0
    %90 = vmatpush1.msra.mxu0 0.0
    %91 = vmatprep.subr.mxu0 0.0
    %92 = vmatpush1.msra.mxu0 0.0
    %93 = vmatprep.subr.mxu0 0.0
    %94 = vmatpush1.msra.mxu0 0.0
    %95 = vmatprep.subr.mxu0 0.0
    %96 = vmatpush1.msra.mxu0 0.0
    %97 = vmatprep.subr.mxu0 0.0
    %98 = vmatpush1.msra.mxu0 0.0
    %99 = vmatprep.subr.mxu0 0.0
    %100 = vmatpush1.msra.mxu0 0.0
    %101 = vmatprep.subr.mxu0 0.0
    %102 = vmatpush1.msra.mxu0 0.0
    %103 = vmatprep.subr.mxu0 0.0
    %104 = vmatpush1.msra.mxu0 0.0
    %105 = vmatprep.subr.mxu0 0.0
    %106 = vmatpush1.msra.mxu0 0.0
    %107 = vmatprep.subr.mxu0 0.0
    %108 = vmatpush1.msra.mxu0 0.0
    %109 = vmatprep.subr.mxu0 0.0
    %110 = vmatpush1.msra.mxu0 0.0
    %111 = vmatprep.subr.mxu0 0.0
    %112 = vmatpush1.msra.mxu0 0.0
    %113 = vmatprep.subr.mxu0 0.0
    %114 = vmatpush1.msra.mxu0 0.0
    %115 = vmatprep.subr.mxu0 0.0
    %116 = vmatpush1.msra.mxu0 0.0
    %117 = vmatprep.subr.mxu0 0.0
    %118 = vmatpush1.msra.mxu0 0.0
    %119 = vmatprep.subr.mxu0 0.0
    %120 = vmatpush1.msra.mxu0 0.0
    %121 = vmatprep.subr.mxu0 0.0
    %122 = vmatpush1.msra.mxu0 0.0
    %123 = vmatprep.subr.mxu0 0.0
    %124 = vmatpush1.msra.mxu0 0.0
    %125 = vmatprep.subr.mxu0 0.0
    %126 = vmatpush1.msra.mxu0 0.0
    %127 = vmatprep.subr.mxu0 0.0
    %128 = vmatpush1.msra.mxu0 0.0
    %129 = vmatprep.subr.mxu0 0.0
    %130 = vmatpush1.msra.mxu0 0.0
    %131 = vmatprep.subr.mxu0 0.0
    %132 = vmatpush1.msra.mxu0 0.0
    %133 = vmatprep.subr.mxu0 0.0
    %134 = vmatpush1.msra.mxu0 0.0
    %135 = vmatprep.subr.mxu0 0.0
    %136 = vmatpush1.msra.mxu0 0.0
    %137 = vmatprep.subr.mxu0 0.0
    %138 = vmatpush1.msra.mxu0 0.0
    %139 = vmatprep.subr.mxu0 0.0
    %140 = vmatpush1.msra.mxu0 0.0
    %141 = vmatprep.subr.mxu0 0.0
    %142 = vmatpush1.msra.mxu0 0.0
    %143 = vmatprep.subr.mxu0 0.0
    %144 = vmatpush1.msra.mxu0 0.0
    %145 = vmatprep.subr.mxu0 0.0
    %146 = vmatpush1.msra.mxu0 0.0
    %147 = vmatprep.mubr.f32.mxu0 0.0
    %148 = vmatmul.mubr.f32.gmra.mrb[0].mxu0 %v81
    %v149 = vpop.f32.mrb[0].mxu0
    %v150 = vadd.f32 0.0, %v149
    %v151 = vpop.f32.mrb[0].mxu0
    %v152 = vadd.f32 0.0, %v151
    %153 = vdwg.mxu0
    %154 = vmatprep.subr.mxu0 %v70
    %155 = vmatpush1.msra.mxu0 %v69
    %156 = vmatprep.subr.mxu0 %v74
    %157 = vmatpush1.msra.mxu0 %v73
    %158 = vmatprep.subr.mxu0 %v78
    %159 = vmatpush1.msra.mxu0 %v77
    %160 = vmatprep.subr.mxu0 0.0
    %161 = vmatpush1.msra.mxu0 0.0
    %162 = vmatprep.subr.mxu0 0.0
    %163 = vmatpush1.msra.mxu0 0.0
    %164 = vmatprep.subr.mxu0 0.0
    %165 = vmatpush1.msra.mxu0 0.0
    %166 = vmatprep.subr.mxu0 0.0
    %167 = vmatpush1.msra.mxu0 0.0
    %168 = vmatprep.subr.mxu0 0.0
    %169 = vmatpush1.msra.mxu0 0.0
    %170 = vmatprep.subr.mxu0 0.0
    %171 = vmatpush1.msra.mxu0 0.0
    %172 = vmatprep.subr.mxu0 0.0
    %173 = vmatpush1.msra.mxu0 0.0
    %174 = vmatprep.subr.mxu0 0.0
    %175 = vmatpush1.msra.mxu0 0.0
    %176 = vmatprep.subr.mxu0 0.0
    %177 = vmatpush1.msra.mxu0 0.0
    %178 = vmatprep.subr.mxu0 0.0
    %179 = vmatpush1.msra.mxu0 0.0
    %180 = vmatprep.subr.mxu0 0.0
    %181 = vmatpush1.msra.mxu0 0.0
    %182 = vmatprep.subr.mxu0 0.0
    %183 = vmatpush1.msra.mxu0 0.0
    %184 = vmatprep.subr.mxu0 0.0
    %185 = vmatpush1.msra.mxu0 0.0
    %186 = vmatprep.subr.mxu0 0.0
    %187 = vmatpush1.msra.mxu0 0.0
    %188 = vmatprep.subr.mxu0 0.0
    %189 = vmatpush1.msra.mxu0 0.0
    %190 = vmatprep.subr.mxu0 0.0
    %191 = vmatpush1.msra.mxu0 0.0
    %192 = vmatprep.subr.mxu0 0.0
    %193 = vmatpush1.msra.mxu0 0.0
    %194 = vmatprep.subr.mxu0 0.0
    %195 = vmatpush1.msra.mxu0 0.0
    %196 = vmatprep.subr.mxu0 0.0
    %197 = vmatpush1.msra.mxu0 0.0
    %198 = vmatprep.subr.mxu0 0.0
    %199 = vmatpush1.msra.mxu0 0.0
    %200 = vmatprep.subr.mxu0 0.0
    %201 = vmatpush1.msra.mxu0 0.0
    %202 = vmatprep.subr.mxu0 0.0
    %203 = vmatpush1.msra.mxu0 0.0
    %204 = vmatprep.subr.mxu0 0.0
    %205 = vmatpush1.msra.mxu0 0.0
    %206 = vmatprep.subr.mxu0 0.0
    %207 = vmatpush1.msra.mxu0 0.0
    %208 = vmatprep.subr.mxu0 0.0
    %209 = vmatpush1.msra.mxu0 0.0
    %210 = vmatprep.subr.mxu0 0.0
    %211 = vmatpush1.msra.mxu0 0.0
    %212 = vmatprep.subr.mxu0 0.0
    %213 = vmatpush1.msra.mxu0 0.0
    %214 = vmatprep.subr.mxu0 0.0
    %215 = vmatpush1.msra.mxu0 0.0
    %216 = vmatprep.subr.mxu0 0.0
    %217 = vmatpush1.msra.mxu0 0.0
    %218 = vmatprep.mubr.f32.mxu0 0.0
    %219 = vmatmul.mubr.f32.gmra.mrb[0].mxu0 %v81
    %v220 = vpop.f32.mrb[0].mxu0
    %v221 = vadd.f32 0.0, %v220
    %v222 = vpop.f32.mrb[0].mxu0
    %v223 = vadd.f32 0.0, %v222
    %224 = vdwg.mxu0
    %v225 = vrot.slane %v150, 4
    %v226 = vadd.f32 %v150, %v225
    %v227 = vrot.slane %v226, 2
    %v228 = vadd.f32 %v226, %v227
    %v229 = vrot.slane %v228, 1
    %v230 = vadd.f32 %v228, %v229
    %v231 = vrot.slane %v152, 4
    %v232 = vadd.f32 %v152, %v231
    %v233 = vrot.slane %v232, 2
    %v234 = vadd.f32 %v232, %v233
    %v235 = vrot.slane %v234, 1
    %v236 = vadd.f32 %v234, %v235
    %v237 = vrot.slane %v221, 4
    %v238 = vadd.f32 %v221, %v237
    %v239 = vrot.slane %v238, 2
    %v240 = vadd.f32 %v238, %v239
    %v241 = vrot.slane %v240, 1
    %v242 = vadd.f32 %v240, %v241
    %v243 = vrot.slane %v223, 4
    %v244 = vadd.f32 %v223, %v243
    %v245 = vrot.slane %v244, 2
    %v246 = vadd.f32 %v244, %v245
    %v247 = vrot.slane %v246, 1
    %v248 = vadd.f32 %v246, %v247
    %v249 = vrcp.pop 8.0
    %v250 = vmul.f32 %v230, %v249
    %v251 = vmul.f32 %v236, %v249
    %v252 = vmul.f32 %v242, %v249
    %v253 = vmul.f32 %v248, %v249
    %v254 = vsub.f32 %v150, %v250
    %v255 = vsub.f32 %v152, %v251
    %v256 = vsub.f32 %v221, %v252
    %v257 = vsub.f32 %v223, %v253
    %v258 = vmul.f32 %v254, %v254
    %v259 = vmul.f32 %v255, %v255
    %v260 = vmul.f32 %v256, %v256
    %v261 = vmul.f32 %v257, %v257
    %v262 = vrot.slane %v258, 4
    %v263 = vadd.f32 %v258, %v262
    %v264 = vrot.slane %v263, 2
    %v265 = vadd.f32 %v263, %v264
    %v266 = vrot.slane %v265, 1
    %v267 = vadd.f32 %v265, %v266
    %v268 = vrot.slane %v259, 4
    %v269 = vadd.f32 %v259, %v268
    %v270 = vrot.slane %v269, 2
    %v271 = vadd.f32 %v269, %v270
    %v272 = vrot.slane %v271, 1
    %v273 = vadd.f32 %v271, %v272
    %v274 = vrot.slane %v260, 4
    %v275 = vadd.f32 %v260, %v274
    %v276 = vrot.slane %v275, 2
    %v277 = vadd.f32 %v275, %v276
    %v278 = vrot.slane %v277, 1
    %v279 = vadd.f32 %v277, %v278
    %v280 = vrot.slane %v261, 4
    %v281 = vadd.f32 %v261, %v280
    %v282 = vrot.slane %v281, 2
    %v283 = vadd.f32 %v281, %v282
    %v284 = vrot.slane %v283, 1
    %v285 = vadd.f32 %v283, %v284
    %v286 = vmul.f32 %v267, %v249
    %v287 = vmul.f32 %v273, %v249
    %v288 = vmul.f32 %v279, %v249
    %v289 = vmul.f32 %v285, %v249
    %v290 = vadd.f32 %v286, 1e-05
    %v291 = vadd.f32 %v287, 1e-05
    %v292 = vadd.f32 %v288, 1e-05
    %v293 = vadd.f32 %v289, 1e-05
    %v294 = vrsqrt.pop %v290
    %v295 = vrsqrt.pop %v291
    %v296 = vrsqrt.pop %v292
    %v297 = vrsqrt.pop %v293
    %v302 = vcombine.low %v294, %v295
    %v303 = vcombine.low %v296, %v297
    %v306 = vmul.f32 %v64, %v302
    %v307 = vmul.f32 %v65, %v303
    %v310 = vlaneseq
    %v311 = vshrl.u32 %v310, 7
    %v312 = vsub.s32 0, %v311
    %v313 = vrot.slane %v306, %v312
    %v314 = vlaneseq
    %v315 = vshrl.u32 %v314, 7
    %v316 = vsub.s32 4, %v315
    %v317 = vrot.slane %v306, %v316
    %v318 = vlaneseq
    %v319 = vshrl.u32 %v318, 7
    %v320 = vsub.s32 0, %v319
    %v321 = vrot.slane %v307, %v320
    %v322 = vlaneseq
    %v323 = vshrl.u32 %v322, 7
    %v324 = vsub.s32 4, %v323
    %v325 = vrot.slane %v307, %v324
    %v330 = vlaneseq
    %v331 = vshrl.u32 %v330, 7
    %v332 = vsub.s32 0, %v331
    %v333 = vrot.slane %v313, %v332
    %v334 = vlaneseq
    %v335 = vshrl.u32 %v334, 7
    %v336 = vsub.s32 0, %v335
    %v337 = vrot.slane %v317, %v336
    %v338 = vlaneseq
    %v339 = vshrl.u32 %v338, 7
    %v340 = vsub.s32 0, %v339
    %v341 = vrot.slane %v321, %v340
    %v342 = vlaneseq
    %v343 = vshrl.u32 %v342, 7
    %v344 = vsub.s32 0, %v343
    %v345 = vrot.slane %v325, %v344
    %v346 = vmul.f32 %v254, %v333
    %v347 = vmul.f32 %v255, %v337
    %v348 = vmul.f32 %v256, %v341
    %v349 = vmul.f32 %v257, %v345
    %v352 = vlaneseq
    %v353 = vshrl.u32 %v352, 7
    %v354 = vsub.s32 1, %v353
    %v355 = vrot.slane %v64, %v354
    %v356 = vlaneseq
    %v357 = vshrl.u32 %v356, 7
    %v358 = vsub.s32 5, %v357
    %v359 = vrot.slane %v64, %v358
    %v360 = vlaneseq
    %v361 = vshrl.u32 %v360, 7
    %v362 = vsub.s32 1, %v361
    %v363 = vrot.slane %v65, %v362
    %v364 = vlaneseq
    %v365 = vshrl.u32 %v364, 7
    %v366 = vsub.s32 5, %v365
    %v367 = vrot.slane %v65, %v366
    %v372 = vlaneseq
    %v373 = vshrl.u32 %v372, 7
    %v374 = vsub.s32 1, %v373
    %v375 = vrot.slane %v355, %v374
    %v376 = vlaneseq
    %v377 = vshrl.u32 %v376, 7
    %v378 = vsub.s32 1, %v377
    %v379 = vrot.slane %v359, %v378
    %v380 = vlaneseq
    %v381 = vshrl.u32 %v380, 7
    %v382 = vsub.s32 1, %v381
    %v383 = vrot.slane %v363, %v382
    %v384 = vlaneseq
    %v385 = vshrl.u32 %v384, 7
    %v386 = vsub.s32 1, %v385
    %v387 = vrot.slane %v367, %v386
    %v388 = vadd.f32 %v346, %v375
    %v389 = vadd.f32 %v347, %v379
    %v390 = vadd.f32 %v348, %v383
    %v391 = vadd.f32 %v349, %v387
    %v392 = vmax.f32 %v388, 0.0
    %v393 = vmax.f32 %v389, 0.0
    %v394 = vmax.f32 %v390, 0.0
    %v395 = vmax.f32 %v391, 0.0
    %v396 = vld [vmem:[#allocation4] sm:$0xff]
    %v397 = vld [vmem:[#allocation4 + $0x8] sm:$0xff]
    %v398 = vld [vmem:[#allocation4 + $0x10] sm:$0xff]
    %v399 = vld [vmem:[#allocation4 + $0x18] sm:$0xff]
    %v400 = vld [vmem:[#allocation4 + $0x20] sm:$0xff]
    %v401 = vld [vmem:[#allocation4 + $0x28] sm:$0xff]
    %v402 = vld [vmem:[#allocation4 + $0x30] sm:$0xff]
    %v403 = vld [vmem:[#allocation4 + $0x38] sm:$0xff]
    %v404 = vld [vmem:[#allocation4 + $0x40] sm:$0xff]
    %v405 = vld [vmem:[#allocation4 + $0x48] sm:$0xff]
    %v406 = vld [vmem:[#allocation4 + $0x50] sm:$0xff]
    %v407 = vld [vmem:[#allocation4 + $0x58] sm:$0xff]
    %v408 = vld [vmem:[#allocation4 + $0x60] sm:$0xff]
    %v409 = vld [vmem:[#allocation4 + $0x68] sm:$0xff]
    %v410 = vld [vmem:[#allocation4 + $0x70] sm:$0xff]
    %v411 = vld [vmem:[#allocation4 + $0x78] sm:$0xff]
    %v412 = vld [vmem:[#allocation4 + $0x80] sm:$0xff]
    %v413 = vld [vmem:[#allocation4 + $0x88] sm:$0xff]
    %v414 = vld [vmem:[#allocation4 + $0x90] sm:$0xff]
    %v415 = vld [vmem:[#allocation4 + $0x98] sm:$0xff]
    %v416 = vld [vmem:[#allocation4 + $0xa0] sm:$0xff]
    %v417 = vld [vmem:[#allocation4 + $0xa8] sm:$0xff]
    %v418 = vld [vmem:[#allocation4 + $0xb0] sm:$0xff]
    %v419 = vld [vmem:[#allocation4 + $0xb8] sm:$0xff]
    %v420 = vld [vmem:[#allocation4 + $0xc0] sm:$0xff]
    %v421 = vld [vmem:[#allocation4 + $0xc8] sm:$0xff]
    %v422 = vld [vmem:[#allocation4 + $0xd0] sm:$0xff]
    %v423 = vld [vmem:[#allocation4 + $0xd8] sm:$0xff]
    %v424 = vld [vmem:[#allocation4 + $0xe0] sm:$0xff]
    %v425 = vld [vmem:[#allocation4 + $0xe8] sm:$0xff]
    %v426 = vld [vmem:[#allocation4 + $0xf0] sm:$0xff]
    %v427 = vld [vmem:[#allocation4 + $0xf8] sm:$0xff]
    %v428 = vld [vmem:[#allocation4 + $0x100] sm:$0xff]
    %v429 = vld [vmem:[#allocation4 + $0x108] sm:$0xff]
    %v430 = vld [vmem:[#allocation4 + $0x110] sm:$0xff]
    %v431 = vld [vmem:[#allocation4 + $0x118] sm:$0xff]
    %v432 = vld [vmem:[#allocation4 + $0x120] sm:$0xff]
    %v433 = vld [vmem:[#allocation4 + $0x128] sm:$0xff]
    %v434 = vld [vmem:[#allocation4 + $0x130] sm:$0xff]
    %v435 = vld [vmem:[#allocation4 + $0x138] sm:$0xff]
    %v436 = vld [vmem:[#allocation4 + $0x140] sm:$0xff]
    %v437 = vld [vmem:[#allocation4 + $0x148] sm:$0xff]
    %v438 = vld [vmem:[#allocation4 + $0x150] sm:$0xff]
    %v439 = vld [vmem:[#allocation4 + $0x158] sm:$0xff]
    %v440 = vld [vmem:[#allocation4 + $0x160] sm:$0xff]
    %v441 = vld [vmem:[#allocation4 + $0x168] sm:$0xff]
    %v442 = vld [vmem:[#allocation4 + $0x170] sm:$0xff]
    %v443 = vld [vmem:[#allocation4 + $0x178] sm:$0xff]
    %v444 = vld [vmem:[#allocation4 + $0x180] sm:$0xff]
    %v445 = vld [vmem:[#allocation4 + $0x188] sm:$0xff]
    %v446 = vld [vmem:[#allocation4 + $0x190] sm:$0xff]
    %v447 = vld [vmem:[#allocation4 + $0x198] sm:$0xff]
    %v448 = vld [vmem:[#allocation4 + $0x1a0] sm:$0xff]
    %v449 = vld [vmem:[#allocation4 + $0x1a8] sm:$0xff]
    %v450 = vld [vmem:[#allocation4 + $0x1b0] sm:$0xff]
    %v451 = vld [vmem:[#allocation4 + $0x1b8] sm:$0xff]
    %v452 = vld [vmem:[#allocation4 + $0x1c0] sm:$0xff]
    %v453 = vld [vmem:[#allocation4 + $0x1c8] sm:$0xff]
    %v454 = vld [vmem:[#allocation4 + $0x1d0] sm:$0xff]
    %v455 = vld [vmem:[#allocation4 + $0x1d8] sm:$0xff]
    %v456 = vld [vmem:[#allocation4 + $0x1e0] sm:$0xff]
    %v457 = vld [vmem:[#allocation4 + $0x1e8] sm:$0xff]
    %v458 = vld [vmem:[#allocation4 + $0x1f0] sm:$0xff]
    %v459 = vld [vmem:[#allocation4 + $0x1f8] sm:$0xff]
    %v460 = vld [vmem:[#allocation4 + $0x200] sm:$0xff]
    %v461 = vld [vmem:[#allocation4 + $0x208] sm:$0xff]
    %v462 = vld [vmem:[#allocation4 + $0x210] sm:$0xff]
    %v463 = vld [vmem:[#allocation4 + $0x218] sm:$0xff]
    %v464 = vld [vmem:[#allocation4 + $0x220] sm:$0xff]
    %v465 = vld [vmem:[#allocation4 + $0x228] sm:$0xff]
    %v466 = vld [vmem:[#allocation4 + $0x230] sm:$0xff]
    %v467 = vld [vmem:[#allocation4 + $0x238] sm:$0xff]
    %v468 = vld [vmem:[#allocation4 + $0x240] sm:$0xff]
    %v469 = vld [vmem:[#allocation4 + $0x248] sm:$0xff]
    %v470 = vld [vmem:[#allocation4 + $0x250] sm:$0xff]
    %v471 = vld [vmem:[#allocation4 + $0x258] sm:$0xff]
    %v472 = vld [vmem:[#allocation4 + $0x260] sm:$0xff]
    %v473 = vld [vmem:[#allocation4 + $0x268] sm:$0xff]
    %v474 = vld [vmem:[#allocation4 + $0x270] sm:$0xff]
    %v475 = vld [vmem:[#allocation4 + $0x278] sm:$0xff]
    %v476 = vld [vmem:[#allocation4 + $0x280] sm:$0xff]
    %v477 = vld [vmem:[#allocation4 + $0x288] sm:$0xff]
    %v478 = vld [vmem:[#allocation4 + $0x290] sm:$0xff]
    %v479 = vld [vmem:[#allocation4 + $0x298] sm:$0xff]
    %v480 = vld [vmem:[#allocation4 + $0x2a0] sm:$0xff]
    %v481 = vld [vmem:[#allocation4 + $0x2a8] sm:$0xff]
    %v482 = vld [vmem:[#allocation4 + $0x2b0] sm:$0xff]
    %v483 = vld [vmem:[#allocation4 + $0x2b8] sm:$0xff]
    %v484 = vld [vmem:[#allocation4 + $0x2c0] sm:$0xff]
    %v485 = vld [vmem:[#allocation4 + $0x2c8] sm:$0xff]
    %v486 = vld [vmem:[#allocation4 + $0x2d0] sm:$0xff]
    %v487 = vld [vmem:[#allocation4 + $0x2d8] sm:$0xff]
    %v488 = vld [vmem:[#allocation4 + $0x2e0] sm:$0xff]
    %v489 = vld [vmem:[#allocation4 + $0x2e8] sm:$0xff]
    %v490 = vld [vmem:[#allocation4 + $0x2f0] sm:$0xff]
    %v491 = vld [vmem:[#allocation4 + $0x2f8] sm:$0xff]
    %v492 = vld [vmem:[#allocation4 + $0x300] sm:$0xff]
    %v493 = vld [vmem:[#allocation4 + $0x308] sm:$0xff]
    %v494 = vld [vmem:[#allocation4 + $0x310] sm:$0xff]
    %v495 = vld [vmem:[#allocation4 + $0x318] sm:$0xff]
    %v496 = vld [vmem:[#allocation4 + $0x320] sm:$0xff]
    %v497 = vld [vmem:[#allocation4 + $0x328] sm:$0xff]
    %v498 = vld [vmem:[#allocation4 + $0x330] sm:$0xff]
    %v499 = vld [vmem:[#allocation4 + $0x338] sm:$0xff]
    %v500 = vld [vmem:[#allocation4 + $0x340] sm:$0xff]
    %v501 = vld [vmem:[#allocation4 + $0x348] sm:$0xff]
    %v502 = vld [vmem:[#allocation4 + $0x350] sm:$0xff]
    %v503 = vld [vmem:[#allocation4 + $0x358] sm:$0xff]
    %v504 = vld [vmem:[#allocation4 + $0x360] sm:$0xff]
    %v505 = vld [vmem:[#allocation4 + $0x368] sm:$0xff]
    %v506 = vld [vmem:[#allocation4 + $0x370] sm:$0xff]
    %v507 = vld [vmem:[#allocation4 + $0x378] sm:$0xff]
    %v508 = vld [vmem:[#allocation4 + $0x380] sm:$0xff]
    %v509 = vld [vmem:[#allocation4 + $0x388] sm:$0xff]
    %v510 = vld [vmem:[#allocation4 + $0x390] sm:$0xff]
    %v511 = vld [vmem:[#allocation4 + $0x398] sm:$0xff]
    %v512 = vld [vmem:[#allocation4 + $0x3a0] sm:$0xff]
    %v513 = vld [vmem:[#allocation4 + $0x3a8] sm:$0xff]
    %v514 = vld [vmem:[#allocation4 + $0x3b0] sm:$0xff]
    %v515 = vld [vmem:[#allocation4 + $0x3b8] sm:$0xff]
    %v516 = vld [vmem:[#allocation4 + $0x3c0] sm:$0xff]
    %v517 = vld [vmem:[#allocation4 + $0x3c8] sm:$0xff]
    %v518 = vld [vmem:[#allocation4 + $0x3d0] sm:$0xff]
    %v519 = vld [vmem:[#allocation4 + $0x3d8] sm:$0xff]
    %v520 = vld [vmem:[#allocation4 + $0x3e0] sm:$0xff]
    %v521 = vld [vmem:[#allocation4 + $0x3e8] sm:$0xff]
    %v522 = vld [vmem:[#allocation4 + $0x3f0] sm:$0xff]
    %v523 = vld [vmem:[#allocation4 + $0x3f8] sm:$0xff]
    %v524 = vld [vmem:[#allocation4 + $0x400] sm:$0xff]
    %v525 = vld [vmem:[#allocation4 + $0x408] sm:$0xff]
    %v526 = vld [vmem:[#allocation4 + $0x410] sm:$0xff]
    %v527 = vld [vmem:[#allocation4 + $0x418] sm:$0xff]
    %v528 = vld [vmem:[#allocation4 + $0x420] sm:$0xff]
    %v529 = vld [vmem:[#allocation4 + $0x428] sm:$0xff]
    %v530 = vld [vmem:[#allocation4 + $0x430] sm:$0xff]
    %v531 = vld [vmem:[#allocation4 + $0x438] sm:$0xff]
    %v532 = vld [vmem:[#allocation4 + $0x440] sm:$0xff]
    %v533 = vld [vmem:[#allocation4 + $0x448] sm:$0xff]
    %v534 = vld [vmem:[#allocation4 + $0x450] sm:$0xff]
    %v535 = vld [vmem:[#allocation4 + $0x458] sm:$0xff]
    %v536 = vld [vmem:[#allocation4 + $0x460] sm:$0xff]
    %v537 = vld [vmem:[#allocation4 + $0x468] sm:$0xff]
    %v538 = vld [vmem:[#allocation4 + $0x470] sm:$0xff]
    %v539 = vld [vmem:[#allocation4 + $0x478] sm:$0xff]
    %v540 = vld [vmem:[#allocation4 + $0x480] sm:$0xff]
    %v541 = vld [vmem:[#allocation4 + $0x488] sm:$0xff]
    %v542 = vld [vmem:[#allocation4 + $0x490] sm:$0xff]
    %v543 = vld [vmem:[#allocation4 + $0x498] sm:$0xff]
    %v544 = vld [vmem:[#allocation4 + $0x4a0] sm:$0xff]
    %v545 = vld [vmem:[#allocation4 + $0x4a8] sm:$0xff]
    %v546 = vld [vmem:[#allocation4 + $0x4b0] sm:$0xff]
    %v547 = vld [vmem:[#allocation4 + $0x4b8] sm:$0xff]
    %v548 = vld [vmem:[#allocation4 + $0x4c0] sm:$0xff]
    %v549 = vld [vmem:[#allocation4 + $0x4c8] sm:$0xff]
    %v550 = vld [vmem:[#allocation4 + $0x4d0] sm:$0xff]
    %v551 = vld [vmem:[#allocation4 + $0x4d8] sm:$0xff]
    %v552 = vld [vmem:[#allocation4 + $0x4e0] sm:$0xff]
    %v553 = vld [vmem:[#allocation4 + $0x4e8] sm:$0xff]
    %v554 = vld [vmem:[#allocation4 + $0x4f0] sm:$0xff]
    %v555 = vld [vmem:[#allocation4 + $0x4f8] sm:$0xff]
    %v556 = vld [vmem:[#allocation4 + $0x500] sm:$0xff]
    %v557 = vld [vmem:[#allocation4 + $0x508] sm:$0xff]
    %v558 = vld [vmem:[#allocation4 + $0x510] sm:$0xff]
    %v559 = vld [vmem:[#allocation4 + $0x518] sm:$0xff]
    %v560 = vld [vmem:[#allocation4 + $0x520] sm:$0xff]
    %v561 = vld [vmem:[#allocation4 + $0x528] sm:$0xff]
    %v562 = vld [vmem:[#allocation4 + $0x530] sm:$0xff]
    %v563 = vld [vmem:[#allocation4 + $0x538] sm:$0xff]
    %v564 = vld [vmem:[#allocation4 + $0x540] sm:$0xff]
    %v565 = vld [vmem:[#allocation4 + $0x548] sm:$0xff]
    %v566 = vld [vmem:[#allocation4 + $0x550] sm:$0xff]
    %v567 = vld [vmem:[#allocation4 + $0x558] sm:$0xff]
    %v568 = vld [vmem:[#allocation4 + $0x560] sm:$0xff]
    %v569 = vld [vmem:[#allocation4 + $0x568] sm:$0xff]
    %v570 = vld [vmem:[#allocation4 + $0x570] sm:$0xff]
    %v571 = vld [vmem:[#allocation4 + $0x578] sm:$0xff]
    %v572 = vld [vmem:[#allocation4 + $0x580] sm:$0xff]
    %v573 = vld [vmem:[#allocation4 + $0x588] sm:$0xff]
    %v574 = vld [vmem:[#allocation4 + $0x590] sm:$0xff]
    %v575 = vld [vmem:[#allocation4 + $0x598] sm:$0xff]
    %v576 = vld [vmem:[#allocation4 + $0x5a0] sm:$0xff]
    %v577 = vld [vmem:[#allocation4 + $0x5a8] sm:$0xff]
    %v578 = vld [vmem:[#allocation4 + $0x5b0] sm:$0xff]
    %v579 = vld [vmem:[#allocation4 + $0x5b8] sm:$0xff]
    %v580 = vld [vmem:[#allocation4 + $0x5c0] sm:$0xff]
    %v581 = vld [vmem:[#allocation4 + $0x5c8] sm:$0xff]
    %v582 = vld [vmem:[#allocation4 + $0x5d0] sm:$0xff]
    %v583 = vld [vmem:[#allocation4 + $0x5d8] sm:$0xff]
    %v584 = vld [vmem:[#allocation4 + $0x5e0] sm:$0xff]
    %v585 = vld [vmem:[#allocation4 + $0x5e8] sm:$0xff]
    %v586 = vld [vmem:[#allocation4 + $0x5f0] sm:$0xff]
    %v587 = vld [vmem:[#allocation4 + $0x5f8] sm:$0xff]
    %v588 = vld [vmem:[#allocation4 + $0x600] sm:$0xff]
    %v589 = vld [vmem:[#allocation4 + $0x608] sm:$0xff]
    %v590 = vld [vmem:[#allocation4 + $0x610] sm:$0xff]
    %v591 = vld [vmem:[#allocation4 + $0x618] sm:$0xff]
    %v592 = vld [vmem:[#allocation4 + $0x620] sm:$0xff]
    %v593 = vld [vmem:[#allocation4 + $0x628] sm:$0xff]
    %v594 = vld [vmem:[#allocation4 + $0x630] sm:$0xff]
    %v595 = vld [vmem:[#allocation4 + $0x638] sm:$0xff]
    %v596 = vld [vmem:[#allocation4 + $0x640] sm:$0xff]
    %v597 = vld [vmem:[#allocation4 + $0x648] sm:$0xff]
    %v598 = vld [vmem:[#allocation4 + $0x650] sm:$0xff]
    %v599 = vld [vmem:[#allocation4 + $0x658] sm:$0xff]
    %v600 = vld [vmem:[#allocation4 + $0x660] sm:$0xff]
    %v601 = vld [vmem:[#allocation4 + $0x668] sm:$0xff]
    %v602 = vld [vmem:[#allocation4 + $0x670] sm:$0xff]
    %v603 = vld [vmem:[#allocation4 + $0x678] sm:$0xff]
    %v604 = vld [vmem:[#allocation4 + $0x680] sm:$0xff]
    %v605 = vld [vmem:[#allocation4 + $0x688] sm:$0xff]
    %v606 = vld [vmem:[#allocation4 + $0x690] sm:$0xff]
    %v607 = vld [vmem:[#allocation4 + $0x698] sm:$0xff]
    %v608 = vld [vmem:[#allocation4 + $0x6a0] sm:$0xff]
    %v609 = vld [vmem:[#allocation4 + $0x6a8] sm:$0xff]
    %v610 = vld [vmem:[#allocation4 + $0x6b0] sm:$0xff]
    %v611 = vld [vmem:[#allocation4 + $0x6b8] sm:$0xff]
    %v612 = vld [vmem:[#allocation4 + $0x6c0] sm:$0xff]
    %v613 = vld [vmem:[#allocation4 + $0x6c8] sm:$0xff]
    %v614 = vld [vmem:[#allocation4 + $0x6d0] sm:$0xff]
    %v615 = vld [vmem:[#allocation4 + $0x6d8] sm:$0xff]
    %v616 = vld [vmem:[#allocation4 + $0x6e0] sm:$0xff]
    %v617 = vld [vmem:[#allocation4 + $0x6e8] sm:$0xff]
    %v618 = vld [vmem:[#allocation4 + $0x6f0] sm:$0xff]
    %v619 = vld [vmem:[#allocation4 + $0x6f8] sm:$0xff]
    %v620 = vld [vmem:[#allocation4 + $0x700] sm:$0xff]
    %v621 = vld [vmem:[#allocation4 + $0x708] sm:$0xff]
    %v622 = vld [vmem:[#allocation4 + $0x710] sm:$0xff]
    %v623 = vld [vmem:[#allocation4 + $0x718] sm:$0xff]
    %v624 = vld [vmem:[#allocation4 + $0x720] sm:$0xff]
    %v625 = vld [vmem:[#allocation4 + $0x728] sm:$0xff]
    %v626 = vld [vmem:[#allocation4 + $0x730] sm:$0xff]
    %v627 = vld [vmem:[#allocation4 + $0x738] sm:$0xff]
    %v628 = vld [vmem:[#allocation4 + $0x740] sm:$0xff]
    %v629 = vld [vmem:[#allocation4 + $0x748] sm:$0xff]
    %v630 = vld [vmem:[#allocation4 + $0x750] sm:$0xff]
    %v631 = vld [vmem:[#allocation4 + $0x758] sm:$0xff]
    %v632 = vld [vmem:[#allocation4 + $0x760] sm:$0xff]
    %v633 = vld [vmem:[#allocation4 + $0x768] sm:$0xff]
    %v634 = vld [vmem:[#allocation4 + $0x770] sm:$0xff]
    %v635 = vld [vmem:[#allocation4 + $0x778] sm:$0xff]
    %v636 = vld [vmem:[#allocation4 + $0x780] sm:$0xff]
    %v637 = vld [vmem:[#allocation4 + $0x788] sm:$0xff]
    %v638 = vld [vmem:[#allocation4 + $0x790] sm:$0xff]
    %v639 = vld [vmem:[#allocation4 + $0x798] sm:$0xff]
    %v640 = vld [vmem:[#allocation4 + $0x7a0] sm:$0xff]
    %v641 = vld [vmem:[#allocation4 + $0x7a8] sm:$0xff]
    %v642 = vld [vmem:[#allocation4 + $0x7b0] sm:$0xff]
    %v643 = vld [vmem:[#allocation4 + $0x7b8] sm:$0xff]
    %v644 = vld [vmem:[#allocation4 + $0x7c0] sm:$0xff]
    %v645 = vld [vmem:[#allocation4 + $0x7c8] sm:$0xff]
    %v646 = vld [vmem:[#allocation4 + $0x7d0] sm:$0xff]
    %v647 = vld [vmem:[#allocation4 + $0x7d8] sm:$0xff]
    %v648 = vld [vmem:[#allocation4 + $0x7e0] sm:$0xff]
    %v649 = vld [vmem:[#allocation4 + $0x7e8] sm:$0xff]
    %v650 = vld [vmem:[#allocation4 + $0x7f0] sm:$0xff]
    %v651 = vld [vmem:[#allocation4 + $0x7f8] sm:$0xff]
    %652 = vmatprep.subr.mxu0 %v397
    %653 = vmatpush1.msra.mxu0 %v396
    %654 = vmatprep.subr.mxu0 %v401
    %655 = vmatpush1.msra.mxu0 %v400
    %656 = vmatprep.subr.mxu0 %v405
    %657 = vmatpush1.msra.mxu0 %v404
    %658 = vmatprep.subr.mxu0 %v409
    %659 = vmatpush1.msra.mxu0 %v408
    %660 = vmatprep.subr.mxu0 %v413
    %661 = vmatpush1.msra.mxu0 %v412
    %662 = vmatprep.subr.mxu0 %v417
    %663 = vmatpush1.msra.mxu0 %v416
    %664 = vmatprep.subr.mxu0 %v421
    %665 = vmatpush1.msra.mxu0 %v420
    %666 = vmatprep.subr.mxu0 %v425
    %667 = vmatpush1.msra.mxu0 %v424
    %668 = vmatprep.subr.mxu0 %v429
    %669 = vmatpush1.msra.mxu0 %v428
    %670 = vmatprep.subr.mxu0 %v433
    %671 = vmatpush1.msra.mxu0 %v432
    %672 = vmatprep.subr.mxu0 %v437
    %673 = vmatpush1.msra.mxu0 %v436
    %674 = vmatprep.subr.mxu0 %v441
    %675 = vmatpush1.msra.mxu0 %v440
    %676 = vmatprep.subr.mxu0 %v445
    %677 = vmatpush1.msra.mxu0 %v444
    %678 = vmatprep.subr.mxu0 %v449
    %679 = vmatpush1.msra.mxu0 %v448
    %680 = vmatprep.subr.mxu0 %v453
    %681 = vmatpush1.msra.mxu0 %v452
    %682 = vmatprep.subr.mxu0 %v457
    %683 = vmatpush1.msra.mxu0 %v456
    %684 = vmatprep.subr.mxu0 %v461
    %685 = vmatpush1.msra.mxu0 %v460
    %686 = vmatprep.subr.mxu0 %v465
    %687 = vmatpush1.msra.mxu0 %v464
    %688 = vmatprep.subr.mxu0 %v469
    %689 = vmatpush1.msra.mxu0 %v468
    %690 = vmatprep.subr.mxu0 %v473
    %691 = vmatpush1.msra.mxu0 %v472
    %692 = vmatprep.subr.mxu0 %v477
    %693 = vmatpush1.msra.mxu0 %v476
    %694 = vmatprep.subr.mxu0 %v481
    %695 = vmatpush1.msra.mxu0 %v480
    %696 = vmatprep.subr.mxu0 %v485
    %697 = vmatpush1.msra.mxu0 %v484
    %698 = vmatprep.subr.mxu0 %v489
    %699 = vmatpush1.msra.mxu0 %v488
    %700 = vmatprep.subr.mxu0 %v493
    %701 = vmatpush1.msra.mxu0 %v492
    %702 = vmatprep.subr.mxu0 %v497
    %703 = vmatpush1.msra.mxu0 %v496
    %704 = vmatprep.subr.mxu0 %v501
    %705 = vmatpush1.msra.mxu0 %v500
    %706 = vmatprep.subr.mxu0 %v505
    %707 = vmatpush1.msra.mxu0 %v504
    %708 = vmatprep.subr.mxu0 %v509
    %709 = vmatpush1.msra.mxu0 %v508
    %710 = vmatprep.subr.mxu0 %v513
    %711 = vmatpush1.msra.mxu0 %v512
    %712 = vmatprep.subr.mxu0 %v517
    %713 = vmatpush1.msra.mxu0 %v516
    %714 = vmatprep.subr.mxu0 %v521
    %715 = vmatpush1.msra.mxu0 %v520
    %716 = vmatprep.mubr.f32.mxu0 %v393
    %717 = vmatmul.mubr.f32.gmra.mrb[0].mxu0 %v392
    %v718 = vpop.f32.mrb[0].mxu0
    %v719 = vadd.f32 0.0, %v718
    %v720 = vpop.f32.mrb[0].mxu0
    %v721 = vadd.f32 0.0, %v720
    %722 = vdwg.mxu0
    %723 = vmatprep.subr.mxu0 %v525
    %724 = vmatpush1.msra.mxu0 %v524
    %725 = vmatprep.subr.mxu0 %v529
    %726 = vmatpush1.msra.mxu0 %v528
    %727 = vmatprep.subr.mxu0 %v533
    %728 = vmatpush1.msra.mxu0 %v532
    %729 = vmatprep.subr.mxu0 %v537
    %730 = vmatpush1.msra.mxu0 %v536
    %731 = vmatprep.subr.mxu0 %v541
    %732 = vmatpush1.msra.mxu0 %v540
    %733 = vmatprep.subr.mxu0 %v545
    %734 = vmatpush1.msra.mxu0 %v544
    %735 = vmatprep.subr.mxu0 %v549
    %736 = vmatpush1.msra.mxu0 %v548
    %737 = vmatprep.subr.mxu0 %v553
    %738 = vmatpush1.msra.mxu0 %v552
    %739 = vmatprep.subr.mxu0 %v557
    %740 = vmatpush1.msra.mxu0 %v556
    %741 = vmatprep.subr.mxu0 %v561
    %742 = vmatpush1.msra.mxu0 %v560
    %743 = vmatprep.subr.mxu0 %v565
    %744 = vmatpush1.msra.mxu0 %v564
    %745 = vmatprep.subr.mxu0 %v569
    %746 = vmatpush1.msra.mxu0 %v568
    %747 = vmatprep.subr.mxu0 %v573
    %748 = vmatpush1.msra.mxu0 %v572
    %749 = vmatprep.subr.mxu0 %v577
    %750 = vmatpush1.msra.mxu0 %v576
    %751 = vmatprep.subr.mxu0 %v581
    %752 = vmatpush1.msra.mxu0 %v580
    %753 = vmatprep.subr.mxu0 %v585
    %754 = vmatpush1.msra.mxu0 %v584
    %755 = vmatprep.subr.mxu0 %v589
    %756 = vmatpush1.msra.mxu0 %v588
    %757 = vmatprep.subr.mxu0 %v593
    %758 = vmatpush1.msra.mxu0 %v592
    %759 = vmatprep.subr.mxu0 %v597
    %760 = vmatpush1.msra.mxu0 %v596
    %761 = vmatprep.subr.mxu0 %v601
    %762 = vmatpush1.msra.mxu0 %v600
    %763 = vmatprep.subr.mxu0 %v605
    %764 = vmatpush1.msra.mxu0 %v604
    %765 = vmatprep.subr.mxu0 %v609
    %766 = vmatpush1.msra.mxu0 %v608
    %767 = vmatprep.subr.mxu0 %v613
    %768 = vmatpush1.msra.mxu0 %v612
    %769 = vmatprep.subr.mxu0 %v617
    %770 = vmatpush1.msra.mxu0 %v616
    %771 = vmatprep.subr.mxu0 %v621
    %772 = vmatpush1.msra.mxu0 %v620
    %773 = vmatprep.subr.mxu0 %v625
    %774 = vmatpush1.msra.mxu0 %v624
    %775 = vmatprep.subr.mxu0 %v629
    %776 = vmatpush1.msra.mxu0 %v628
    %777 = vmatprep.subr.mxu0 %v633
    %778 = vmatpush1.msra.mxu0 %v632
    %779 = vmatprep.subr.mxu0 %v637
    %780 = vmatpush1.msra.mxu0 %v636
    %781 = vmatprep.subr.mxu0 %v641
    %782 = vmatpush1.msra.mxu0 %v640
    %783 = vmatprep.subr.mxu0 %v645
    %784 = vmatpush1.msra.mxu0 %v644
    %785 = vmatprep.subr.mxu0 %v649
    %786 = vmatpush1.msra.mxu0 %v648
    %787 = vmatprep.mubr.f32.mxu0 %v395
    %788 = vmatmul.mubr.f32.gmra.mrb[0].mxu0 %v394
    %v789 = vpop.f32.mrb[0].mxu0
    %v790 = vadd.f32 %v719, %v789
    %v791 = vpop.f32.mrb[0].mxu0
    %v792 = vadd.f32 %v721, %v791
    %793 = vdwg.mxu0
    %794 = vmatprep.subr.mxu0 %v399
    %795 = vmatpush1.msra.mxu0 %v398
    %796 = vmatprep.subr.mxu0 %v403
    %797 = vmatpush1.msra.mxu0 %v402
    %798 = vmatprep.subr.mxu0 %v407
    %799 = vmatpush1.msra.mxu0 %v406
    %800 = vmatprep.subr.mxu0 %v411
    %801 = vmatpush1.msra.mxu0 %v410
    %802 = vmatprep.subr.mxu0 %v415
    %803 = vmatpush1.msra.mxu0 %v414
    %804 = vmatprep.subr.mxu0 %v419
    %805 = vmatpush1.msra.mxu0 %v418
    %806 = vmatprep.subr.mxu0 %v423
    %807 = vmatpush1.msra.mxu0 %v422
    %808 = vmatprep.subr.mxu0 %v427
    %809 = vmatpush1.msra.mxu0 %v426
    %810 = vmatprep.subr.mxu0 %v431
    %811 = vmatpush1.msra.mxu0 %v430
    %812 = vmatprep.subr.mxu0 %v435
    %813 = vmatpush1.msra.mxu0 %v434
    %814 = vmatprep.subr.mxu0 %v439
    %815 = vmatpush1.msra.mxu0 %v438
    %816 = vmatprep.subr.mxu0 %v443
    %817 = vmatpush1.msra.mxu0 %v442
    %818 = vmatprep.subr.mxu0 %v447
    %819 = vmatpush1.msra.mxu0 %v446
    %820 = vmatprep.subr.mxu0 %v451
    %821 = vmatpush1.msra.mxu0 %v450
    %822 = vmatprep.subr.mxu0 %v455
    %823 = vmatpush1.msra.mxu0 %v454
    %824 = vmatprep.subr.mxu0 %v459
    %825 = vmatpush1.msra.mxu0 %v458
    %826 = vmatprep.subr.mxu0 %v463
    %827 = vmatpush1.msra.mxu0 %v462
    %828 = vmatprep.subr.mxu0 %v467
    %829 = vmatpush1.msra.mxu0 %v466
    %830 = vmatprep.subr.mxu0 %v471
    %831 = vmatpush1.msra.mxu0 %v470
    %832 = vmatprep.subr.mxu0 %v475
    %833 = vmatpush1.msra.mxu0 %v474
    %834 = vmatprep.subr.mxu0 %v479
    %835 = vmatpush1.msra.mxu0 %v478
    %836 = vmatprep.subr.mxu0 %v483
    %837 = vmatpush1.msra.mxu0 %v482
    %838 = vmatprep.subr.mxu0 %v487
    %839 = vmatpush1.msra.mxu0 %v486
    %840 = vmatprep.subr.mxu0 %v491
    %841 = vmatpush1.msra.mxu0 %v490
    %842 = vmatprep.subr.mxu0 %v495
    %843 = vmatpush1.msra.mxu0 %v494
    %844 = vmatprep.subr.mxu0 %v499
    %845 = vmatpush1.msra.mxu0 %v498
    %846 = vmatprep.subr.mxu0 %v503
    %847 = vmatpush1.msra.mxu0 %v502
    %848 = vmatprep.subr.mxu0 %v507
    %849 = vmatpush1.msra.mxu0 %v506
    %850 = vmatprep.subr.mxu0 %v511
    %851 = vmatpush1.msra.mxu0 %v510
    %852 = vmatprep.subr.mxu0 %v515
    %853 = vmatpush1.msra.mxu0 %v514
    %854 = vmatprep.subr.mxu0 %v519
    %855 = vmatpush1.msra.mxu0 %v518
    %856 = vmatprep.subr.mxu0 %v523
    %857 = vmatpush1.msra.mxu0 %v522
    %858 = vmatprep.mubr.f32.mxu0 %v393
    %859 = vmatmul.mubr.f32.gmra.mrb[0].mxu0 %v392
    %v860 = vpop.f32.mrb[0].mxu0
    %v861 = vadd.f32 0.0, %v860
    %v862 = vpop.f32.mrb[0].mxu0
    %v863 = vadd.f32 0.0, %v862
    %864 = vdwg.mxu0
    %865 = vmatprep.subr.mxu0 %v527
    %866 = vmatpush1.msra.mxu0 %v526
    %867 = vmatprep.subr.mxu0 %v531
    %868 = vmatpush1.msra.mxu0 %v530
    %869 = vmatprep.subr.mxu0 %v535
    %870 = vmatpush1.msra.mxu0 %v534
    %871 = vmatprep.subr.mxu0 %v539
    %872 = vmatpush1.msra.mxu0 %v538
    %873 = vmatprep.subr.mxu0 %v543
    %874 = vmatpush1.msra.mxu0 %v542
    %875 = vmatprep.subr.mxu0 %v547
    %876 = vmatpush1.msra.mxu0 %v546
    %877 = vmatprep.subr.mxu0 %v551
    %878 = vmatpush1.msra.mxu0 %v550
    %879 = vmatprep.subr.mxu0 %v555
    %880 = vmatpush1.msra.mxu0 %v554
    %881 = vmatprep.subr.mxu0 %v559
    %882 = vmatpush1.msra.mxu0 %v558
    %883 = vmatprep.subr.mxu0 %v563
    %884 = vmatpush1.msra.mxu0 %v562
    %885 = vmatprep.subr.mxu0 %v567
    %886 = vmatpush1.msra.mxu0 %v566
    %887 = vmatprep.subr.mxu0 %v571
    %888 = vmatpush1.msra.mxu0 %v570
    %889 = vmatprep.subr.mxu0 %v575
    %890 = vmatpush1.msra.mxu0 %v574
    %891 = vmatprep.subr.mxu0 %v579
    %892 = vmatpush1.msra.mxu0 %v578
    %893 = vmatprep.subr.mxu0 %v583
    %894 = vmatpush1.msra.mxu0 %v582
    %895 = vmatprep.subr.mxu0 %v587
    %896 = vmatpush1.msra.mxu0 %v586
    %897 = vmatprep.subr.mxu0 %v591
    %898 = vmatpush1.msra.mxu0 %v590
    %899 = vmatprep.subr.mxu0 %v595
    %900 = vmatpush1.msra.mxu0 %v594
    %901 = vmatprep.subr.mxu0 %v599
    %902 = vmatpush1.msra.mxu0 %v598
    %903 = vmatprep.subr.mxu0 %v603
    %904 = vmatpush1.msra.mxu0 %v602
    %905 = vmatprep.subr.mxu0 %v607
    %906 = vmatpush1.msra.mxu0 %v606
    %907 = vmatprep.subr.mxu0 %v611
    %908 = vmatpush1.msra.mxu0 %v610
    %909 = vmatprep.subr.mxu0 %v615
    %910 = vmatpush1.msra.mxu0 %v614
    %911 = vmatprep.subr.mxu0 %v619
    %912 = vmatpush1.msra.mxu0 %v618
    %913 = vmatprep.subr.mxu0 %v623
    %914 = vmatpush1.msra.mxu0 %v622
    %915 = vmatprep.subr.mxu0 %v627
    %916 = vmatpush1.msra.mxu0 %v626
    %917 = vmatprep.subr.mxu0 %v631
    %918 = vmatpush1.msra.mxu0 %v630
    %919 = vmatprep.subr.mxu0 %v635
    %920 = vmatpush1.msra.mxu0 %v634
    %921 = vmatprep.subr.mxu0 %v639
    %922 = vmatpush1.msra.mxu0 %v638
    %923 = vmatprep.subr.mxu0 %v643
    %924 = vmatpush1.msra.mxu0 %v642
    %925 = vmatprep.subr.mxu0 %v647
    %926 = vmatpush1.msra.mxu0 %v646
    %927 = vmatprep.subr.mxu0 %v651
    %928 = vmatpush1.msra.mxu0 %v650
    %929 = vmatprep.mubr.f32.mxu0 %v395
    %930 = vmatmul.mubr.f32.gmra.mrb[0].mxu0 %v394
    %v931 = vpop.f32.mrb[0].mxu0
    %v932 = vadd.f32 %v861, %v931
    %v933 = vpop.f32.mrb[0].mxu0
    %v934 = vadd.f32 %v863, %v933
    %935 = vdwg.mxu0
    %v936 = vrot.slane %v790, 4
    %v937 = vadd.f32 %v790, %v936
    %v938 = vrot.slane %v937, 2
    %v939 = vadd.f32 %v937, %v938
    %v940 = vrot.slane %v939, 1
    %v941 = vadd.f32 %v939, %v940
    %v942 = vrot.slane %v792, 4
    %v943 = vadd.f32 %v792, %v942
    %v944 = vrot.slane %v943, 2
    %v945 = vadd.f32 %v943, %v944
    %v946 = vrot.slane %v945, 1
    %v947 = vadd.f32 %v945, %v946
    %v948 = vrot.slane %v932, 4
    %v949 = vadd.f32 %v932, %v948
    %v950 = vrot.slane %v949, 2
    %v951 = vadd.f32 %v949, %v950
    %v952 = vrot.slane %v951, 1
    %v953 = vadd.f32 %v951, %v952
    %v954 = vrot.slane %v934, 4
    %v955 = vadd.f32 %v934, %v954
    %v956 = vrot.slane %v955, 2
    %v957 = vadd.f32 %v955, %v956
    %v958 = vrot.slane %v957, 1
    %v959 = vadd.f32 %v957, %v958
    %v960 = vmul.f32 %v941, %v249
    %v961 = vmul.f32 %v947, %v249
    %v962 = vmul.f32 %v953, %v249
    %v963 = vmul.f32 %v959, %v249
    %v964 = vsub.f32 %v790, %v960
    %v965 = vsub.f32 %v792, %v961
    %v966 = vsub.f32 %v932, %v962
    %v967 = vsub.f32 %v934, %v963
    %v968 = vmul.f32 %v964, %v964
    %v969 = vmul.f32 %v965, %v965
    %v970 = vmul.f32 %v966, %v966
    %v971 = vmul.f32 %v967, %v967
    %v972 = vrot.slane %v968, 4
    %v973 = vadd.f32 %v968, %v972
    %v974 = vrot.slane %v973, 2
    %v975 = vadd.f32 %v973, %v974
    %v976 = vrot.slane %v975, 1
    %v977 = vadd.f32 %v975, %v976
    %v978 = vrot.slane %v969, 4
    %v979 = vadd.f32 %v969, %v978
    %v980 = vrot.slane %v979, 2
    %v981 = vadd.f32 %v979, %v980
    %v982 = vrot.slane %v981, 1
    %v983 = vadd.f32 %v981, %v982
    %v984 = vrot.slane %v970, 4
    %v985 = vadd.f32 %v970, %v984
    %v986 = vrot.slane %v985, 2
    %v987 = vadd.f32 %v985, %v986
    %v988 = vrot.slane %v987, 1
    %v989 = vadd.f32 %v987, %v988
    %v990 = vrot.slane %v971, 4
    %v991 = vadd.f32 %v971, %v990
    %v992 = vrot.slane %v991, 2
    %v993 = vadd.f32 %v991, %v992
    %v994 = vrot.slane %v993, 1
    %v995 = vadd.f32 %v993, %v994
    %v996 = vmul.f32 %v977, %v249
    %v997 = vmul.f32 %v983, %v249
    %v998 = vmul.f32 %v989, %v249
    %v999 = vmul.f32 %v995, %v249
    %v1000 = vadd.f32 %v996, 1e-05
    %v1001 = vadd.f32 %v997, 1e-05
    %v1002 = vadd.f32 %v998, 1e-05
    %v1003 = vadd.f32 %v999, 1e-05
    %v1004 = vrsqrt.pop %v1000
    %v1005 = vrsqrt.pop %v1001
    %v1006 = vrsqrt.pop %v1002
    %v1007 = vrsqrt.pop %v1003
    %v1012 = vcombine.low %v1004, %v1005
    %v1013 = vcombine.low %v1006, %v1007
    %v1014 = vrot.slane %v1012, 6
    %v1015 = vrot.slane %v1013, 6
    %v1018 = vmul.f32 %v64, %v1014
    %v1019 = vmul.f32 %v65, %v1015
    %v1022 = vlaneseq
    %v1023 = vshrl.u32 %v1022, 7
    %v1024 = vsub.s32 2, %v1023
    %v1025 = vrot.slane %v1018, %v1024
    %v1026 = vlaneseq
    %v1027 = vshrl.u32 %v1026, 7
    %v1028 = vsub.s32 6, %v1027
    %v1029 = vrot.slane %v1018, %v1028
    %v1030 = vlaneseq
    %v1031 = vshrl.u32 %v1030, 7
    %v1032 = vsub.s32 2, %v1031
    %v1033 = vrot.slane %v1019, %v1032
    %v1034 = vlaneseq
    %v1035 = vshrl.u32 %v1034, 7
    %v1036 = vsub.s32 6, %v1035
    %v1037 = vrot.slane %v1019, %v1036
    %v1042 = vlaneseq
    %v1043 = vshrl.u32 %v1042, 7
    %v1044 = vsub.s32 2, %v1043
    %v1045 = vrot.slane %v1025, %v1044
    %v1046 = vlaneseq
    %v1047 = vshrl.u32 %v1046, 7
    %v1048 = vsub.s32 2, %v1047
    %v1049 = vrot.slane %v1029, %v1048
    %v1050 = vlaneseq
    %v1051 = vshrl.u32 %v1050, 7
    %v1052 = vsub.s32 2, %v1051
    %v1053 = vrot.slane %v1033, %v1052
    %v1054 = vlaneseq
    %v1055 = vshrl.u32 %v1054, 7
    %v1056 = vsub.s32 2, %v1055
    %v1057 = vrot.slane %v1037, %v1056
    %v1058 = vmul.f32 %v964, %v1045
    %v1059 = vmul.f32 %v965, %v1049
    %v1060 = vmul.f32 %v966, %v1053
    %v1061 = vmul.f32 %v967, %v1057
    %v1062 = vlaneseq
    %v1063 = vshrl.u32 %v1062, 7
    %v1064 = vsub.s32 3, %v1063
    %v1065 = vrot.slane %v64, %v1064
    %v1066 = vlaneseq
    %v1067 = vshrl.u32 %v1066, 7
    %v1068 = vsub.s32 7, %v1067
    %v1069 = vrot.slane %v64, %v1068
    %v1070 = vlaneseq
    %v1071 = vshrl.u32 %v1070, 7
    %v1072 = vsub.s32 3, %v1071
    %v1073 = vrot.slane %v65, %v1072
    %v1074 = vlaneseq
    %v1075 = vshrl.u32 %v1074, 7
    %v1076 = vsub.s32 7, %v1075
    %v1077 = vrot.slane %v65, %v1076
    %v1082 = vlaneseq
    %v1083 = vshrl.u32 %v1082, 7
    %v1084 = vsub.s32 3, %v1083
    %v1085 = vrot.slane %v1065, %v1084
    %v1086 = vlaneseq
    %v1087 = vshrl.u32 %v1086, 7
    %v1088 = vsub.s32 3, %v1087
    %v1089 = vrot.slane %v1069, %v1088
    %v1090 = vlaneseq
    %v1091 = vshrl.u32 %v1090, 7
    %v1092 = vsub.s32 3, %v1091
    %v1093 = vrot.slane %v1073, %v1092
    %v1094 = vlaneseq
    %v1095 = vshrl.u32 %v1094, 7
    %v1096 = vsub.s32 3, %v1095
    %v1097 = vrot.slane %v1077, %v1096
    %v1098 = vadd.f32 %v1058, %v1085
    %v1099 = vadd.f32 %v1059, %v1089
    %v1100 = vadd.f32 %v1060, %v1093
    %v1101 = vadd.f32 %v1061, %v1097
    %v1102 = vmax.f32 %v1098, 0.0
    %v1103 = vmax.f32 %v1099, 0.0
    %v1104 = vmax.f32 %v1100, 0.0
    %v1105 = vmax.f32 %v1101, 0.0
    %v1106 = vld [vmem:[#allocation6] sm:$0xff]
    %v1107 = vld [vmem:[#allocation6 + $0x8] sm:$0xff]
    %v1108 = vld [vmem:[#allocation6 + $0x10] sm:$0xff]
    %v1109 = vld [vmem:[#allocation6 + $0x18] sm:$0xff]
    %v1110 = vld [vmem:[#allocation6 + $0x20] sm:$0xff]
    %v1111 = vld [vmem:[#allocation6 + $0x28] sm:$0xff]
    %v1112 = vld [vmem:[#allocation6 + $0x30] sm:$0xff]
    %v1113 = vld [vmem:[#allocation6 + $0x38] sm:$0xff]
    %v1114 = vld [vmem:[#allocation6 + $0x40] sm:$0xff]
    %v1115 = vld [vmem:[#allocation6 + $0x48] sm:$0xff]
    %v1116 = vld [vmem:[#allocation6 + $0x50] sm:$0xff]
    %v1117 = vld [vmem:[#allocation6 + $0x58] sm:$0xff]
    %v1118 = vld [vmem:[#allocation6 + $0x60] sm:$0xff]
    %v1119 = vld [vmem:[#allocation6 + $0x68] sm:$0xff]
    %v1120 = vld [vmem:[#allocation6 + $0x70] sm:$0xff]
    %v1121 = vld [vmem:[#allocation6 + $0x78] sm:$0xff]
    %v1122 = vld [vmem:[#allocation6 + $0x80] sm:$0xff]
    %v1123 = vld [vmem:[#allocation6 + $0x88] sm:$0xff]
    %v1124 = vld [vmem:[#allocation6 + $0x90] sm:$0xff]
    %v1125 = vld [vmem:[#allocation6 + $0x98] sm:$0xff]
    %v1126 = vld [vmem:[#allocation6 + $0xa0] sm:$0xff]
    %v1127 = vld [vmem:[#allocation6 + $0xa8] sm:$0xff]
    %v1128 = vld [vmem:[#allocation6 + $0xb0] sm:$0xff]
    %v1129 = vld [vmem:[#allocation6 + $0xb8] sm:$0xff]
    %v1130 = vld [vmem:[#allocation6 + $0xc0] sm:$0xff]
    %v1131 = vld [vmem:[#allocation6 + $0xc8] sm:$0xff]
    %v1132 = vld [vmem:[#allocation6 + $0xd0] sm:$0xff]
    %v1133 = vld [vmem:[#allocation6 + $0xd8] sm:$0xff]
    %v1134 = vld [vmem:[#allocation6 + $0xe0] sm:$0xff]
    %v1135 = vld [vmem:[#allocation6 + $0xe8] sm:$0xff]
    %v1136 = vld [vmem:[#allocation6 + $0xf0] sm:$0xff]
    %v1137 = vld [vmem:[#allocation6 + $0xf8] sm:$0xff]
    %v1138 = vld [vmem:[#allocation6 + $0x100] sm:$0xff]
    %v1139 = vld [vmem:[#allocation6 + $0x108] sm:$0xff]
    %v1140 = vld [vmem:[#allocation6 + $0x110] sm:$0xff]
    %v1141 = vld [vmem:[#allocation6 + $0x118] sm:$0xff]
    %v1142 = vld [vmem:[#allocation6 + $0x120] sm:$0xff]
    %v1143 = vld [vmem:[#allocation6 + $0x128] sm:$0xff]
    %v1144 = vld [vmem:[#allocation6 + $0x130] sm:$0xff]
    %v1145 = vld [vmem:[#allocation6 + $0x138] sm:$0xff]
    %v1146 = vld [vmem:[#allocation6 + $0x140] sm:$0xff]
    %v1147 = vld [vmem:[#allocation6 + $0x148] sm:$0xff]
    %v1148 = vld [vmem:[#allocation6 + $0x150] sm:$0xff]
    %v1149 = vld [vmem:[#allocation6 + $0x158] sm:$0xff]
    %v1150 = vld [vmem:[#allocation6 + $0x160] sm:$0xff]
    %v1151 = vld [vmem:[#allocation6 + $0x168] sm:$0xff]
    %v1152 = vld [vmem:[#allocation6 + $0x170] sm:$0xff]
    %v1153 = vld [vmem:[#allocation6 + $0x178] sm:$0xff]
    %v1154 = vld [vmem:[#allocation6 + $0x180] sm:$0xff]
    %v1155 = vld [vmem:[#allocation6 + $0x188] sm:$0xff]
    %v1156 = vld [vmem:[#allocation6 + $0x190] sm:$0xff]
    %v1157 = vld [vmem:[#allocation6 + $0x198] sm:$0xff]
    %v1158 = vld [vmem:[#allocation6 + $0x1a0] sm:$0xff]
    %v1159 = vld [vmem:[#allocation6 + $0x1a8] sm:$0xff]
    %v1160 = vld [vmem:[#allocation6 + $0x1b0] sm:$0xff]
    %v1161 = vld [vmem:[#allocation6 + $0x1b8] sm:$0xff]
    %v1162 = vld [vmem:[#allocation6 + $0x1c0] sm:$0xff]
    %v1163 = vld [vmem:[#allocation6 + $0x1c8] sm:$0xff]
    %v1164 = vld [vmem:[#allocation6 + $0x1d0] sm:$0xff]
    %v1165 = vld [vmem:[#allocation6 + $0x1d8] sm:$0xff]
    %v1166 = vld [vmem:[#allocation6 + $0x1e0] sm:$0xff]
    %v1167 = vld [vmem:[#allocation6 + $0x1e8] sm:$0xff]
    %v1168 = vld [vmem:[#allocation6 + $0x1f0] sm:$0xff]
    %v1169 = vld [vmem:[#allocation6 + $0x1f8] sm:$0xff]
    %v1170 = vld [vmem:[%s5] sm:$0x1]
    %v1172 = vlaneseq
    %v1173 = vshrl.u32 %v1172, 7
    %v1174 = vsub.s32 0, %v1173
    %v1175 = vrot.slane %v1170, %v1174
    %1177 = vmatprep.subr.mxu0 0.0
    %1178 = vmatpush1.msra.mxu0 %v1106
    %1179 = vmatprep.subr.mxu0 0.0
    %1180 = vmatpush1.msra.mxu0 %v1107
    %1181 = vmatprep.subr.mxu0 0.0
    %1182 = vmatpush1.msra.mxu0 %v1108
    %1183 = vmatprep.subr.mxu0 0.0
    %1184 = vmatpush1.msra.mxu0 %v1109
    %1185 = vmatprep.subr.mxu0 0.0
    %1186 = vmatpush1.msra.mxu0 %v1110
    %1187 = vmatprep.subr.mxu0 0.0
    %1188 = vmatpush1.msra.mxu0 %v1111
    %1189 = vmatprep.subr.mxu0 0.0
    %1190 = vmatpush1.msra.mxu0 %v1112
    %1191 = vmatprep.subr.mxu0 0.0
    %1192 = vmatpush1.msra.mxu0 %v1113
    %1193 = vmatprep.subr.mxu0 0.0
    %1194 = vmatpush1.msra.mxu0 %v1114
    %1195 = vmatprep.subr.mxu0 0.0
    %1196 = vmatpush1.msra.mxu0 %v1115
    %1197 = vmatprep.subr.mxu0 0.0
    %1198 = vmatpush1.msra.mxu0 %v1116
    %1199 = vmatprep.subr.mxu0 0.0
    %1200 = vmatpush1.msra.mxu0 %v1117
    %1201 = vmatprep.subr.mxu0 0.0
    %1202 = vmatpush1.msra.mxu0 %v1118
    %1203 = vmatprep.subr.mxu0 0.0
    %1204 = vmatpush1.msra.mxu0 %v1119
    %1205 = vmatprep.subr.mxu0 0.0
    %1206 = vmatpush1.msra.mxu0 %v1120
    %1207 = vmatprep.subr.mxu0 0.0
    %1208 = vmatpush1.msra.mxu0 %v1121
    %1209 = vmatprep.subr.mxu0 0.0
    %1210 = vmatpush1.msra.mxu0 %v1122
    %1211 = vmatprep.subr.mxu0 0.0
    %1212 = vmatpush1.msra.mxu0 %v1123
    %1213 = vmatprep.subr.mxu0 0.0
    %1214 = vmatpush1.msra.mxu0 %v1124
    %1215 = vmatprep.subr.mxu0 0.0
    %1216 = vmatpush1.msra.mxu0 %v1125
    %1217 = vmatprep.subr.mxu0 0.0
    %1218 = vmatpush1.msra.mxu0 %v1126
    %1219 = vmatprep.subr.mxu0 0.0
    %1220 = vmatpush1.msra.mxu0 %v1127
    %1221 = vmatprep.subr.mxu0 0.0
    %1222 = vmatpush1.msra.mxu0 %v1128
    %1223 = vmatprep.subr.mxu0 0.0
    %1224 = vmatpush1.msra.mxu0 %v1129
    %1225 = vmatprep.subr.mxu0 0.0
    %1226 = vmatpush1.msra.mxu0 %v1130
    %1227 = vmatprep.subr.mxu0 0.0
    %1228 = vmatpush1.msra.mxu0 %v1131
    %1229 = vmatprep.subr.mxu0 0.0
    %1230 = vmatpush1.msra.mxu0 %v1132
    %1231 = vmatprep.subr.mxu0 0.0
    %1232 = vmatpush1.msra.mxu0 %v1133
    %1233 = vmatprep.subr.mxu0 0.0
    %1234 = vmatpush1.msra.mxu0 %v1134
    %1235 = vmatprep.subr.mxu0 0.0
    %1236 = vmatpush1.msra.mxu0 %v1135
    %1237 = vmatprep.subr.mxu0 0.0
    %1238 = vmatpush1.msra.mxu0 %v1136
    %1239 = vmatprep.subr.mxu0 0.0
    %1240 = vmatpush1.msra.mxu0 %v1137
    %1241 = vmatprep.mubr.f32.mxu0 %v1103
    %1242 = vmatmul.mubr.f32.gmra.mrb[0].mxu0 %v1102
    %v1243 = vpop.f32.mrb[0].mxu0
    %v1244 = vadd.f32 %v1175, %v1243
    %v1245 = vpop.f32.mrb[0].mxu0
    %1246 = vdwg.mxu0
    %1247 = vmatprep.subr.mxu0 0.0
    %1248 = vmatpush1.msra.mxu0 %v1138
    %1249 = vmatprep.subr.mxu0 0.0
    %1250 = vmatpush1.msra.mxu0 %v1139
    %1251 = vmatprep.subr.mxu0 0.0
    %1252 = vmatpush1.msra.mxu0 %v1140
    %1253 = vmatprep.subr.mxu0 0.0
    %1254 = vmatpush1.msra.mxu0 %v1141
    %1255 = vmatprep.subr.mxu0 0.0
    %1256 = vmatpush1.msra.mxu0 %v1142
    %1257 = vmatprep.subr.mxu0 0.0
    %1258 = vmatpush1.msra.mxu0 %v1143
    %1259 = vmatprep.subr.mxu0 0.0
    %1260 = vmatpush1.msra.mxu0 %v1144
    %1261 = vmatprep.subr.mxu0 0.0
    %1262 = vmatpush1.msra.mxu0 %v1145
    %1263 = vmatprep.subr.mxu0 0.0
    %1264 = vmatpush1.msra.mxu0 %v1146
    %1265 = vmatprep.subr.mxu0 0.0
    %1266 = vmatpush1.msra.mxu0 %v1147
    %1267 = vmatprep.subr.mxu0 0.0
    %1268 = vmatpush1.msra.mxu0 %v1148
    %1269 = vmatprep.subr.mxu0 0.0
    %1270 = vmatpush1.msra.mxu0 %v1149
    %1271 = vmatprep.subr.mxu0 0.0
    %1272 = vmatpush1.msra.mxu0 %v1150
    %1273 = vmatprep.subr.mxu0 0.0
    %1274 = vmatpush1.msra.mxu0 %v1151
    %1275 = vmatprep.subr.mxu0 0.0
    %1276 = vmatpush1.msra.mxu0 %v1152
    %1277 = vmatprep.subr.mxu0 0.0
    %1278 = vmatpush1.msra.mxu0 %v1153
    %1279 = vmatprep.subr.mxu0 0.0
    %1280 = vmatpush1.msra.mxu0 %v1154
    %1281 = vmatprep.subr.mxu0 0.0
    %1282 = vmatpush1.msra.mxu0 %v1155
    %1283 = vmatprep.subr.mxu0 0.0
    %1284 = vmatpush1.msra.mxu0 %v1156
    %1285 = vmatprep.subr.mxu0 0.0
    %1286 = vmatpush1.msra.mxu0 %v1157
    %1287 = vmatprep.subr.mxu0 0.0
    %1288 = vmatpush1.msra.mxu0 %v1158
    %1289 = vmatprep.subr.mxu0 0.0
    %1290 = vmatpush1.msra.mxu0 %v1159
    %1291 = vmatprep.subr.mxu0 0.0
    %1292 = vmatpush1.msra.mxu0 %v1160
    %1293 = vmatprep.subr.mxu0 0.0
    %1294 = vmatpush1.msra.mxu0 %v1161
    %1295 = vmatprep.subr.mxu0 0.0
    %1296 = vmatpush1.msra.mxu0 %v1162
    %1297 = vmatprep.subr.mxu0 0.0
    %1298 = vmatpush1.msra.mxu0 %v1163
    %1299 = vmatprep.subr.mxu0 0.0
    %1300 = vmatpush1.msra.mxu0 %v1164
    %1301 = vmatprep.subr.mxu0 0.0
    %1302 = vmatpush1.msra.mxu0 %v1165
    %1303 = vmatprep.subr.mxu0 0.0
    %1304 = vmatpush1.msra.mxu0 %v1166
    %1305 = vmatprep.subr.mxu0 0.0
    %1306 = vmatpush1.msra.mxu0 %v1167
    %1307 = vmatprep.subr.mxu0 0.0
    %1308 = vmatpush1.msra.mxu0 %v1168
    %1309 = vmatprep.subr.mxu0 0.0
    %1310 = vmatpush1.msra.mxu0 %v1169
    %1311 = vmatprep.mubr.f32.mxu0 %v1105
    %1312 = vmatmul.mubr.f32.gmra.mrb[0].mxu0 %v1104
    %v1313 = vpop.f32.mrb[0].mxu0
    %v1314 = vadd.f32 %v1244, %v1313
    %v1315 = vpop.f32.mrb[0].mxu0
    %1316 = vdwg.mxu0
    %1317 = vst [vmem:[%s6] sm:$0xff] %v1314
    // Predicated region
    $region38: #{generator_forward.1} parent=1 // pred_check
      _
    $region39: #{generator_forward.1} parent=1 // pred_check_branch
      %1319 = sbr.rel (0) target = $region41
    $region40: #{generator_forward.1} parent=1 // pred_region
      _
    $region41: #{generator_forward.1} parent=1 // pred_fallthru
      _
    // Predicated region
    $region42: #{generator_forward.1} parent=1 // pred_check
      _
    $region43: #{generator_forward.1} parent=1 // pred_check_branch
      %1321 = sbr.rel (0) target = $region45
    $region44: #{generator_forward.1} parent=1 // pred_region
      _
    $region45: #{generator_forward.1} parent=1 // pred_fallthru
      _
    %1322 = vsyncpa [#allocation3], 1
    %1323 = vsyncpa [#allocation5], 1

</llo_original>
